<compile_context>
chip_gen: v5e
topology: v5e:2x2
jax: 0.10.0
libtpu: 0.0.40
codegen_flags: <defaults>
</compile_context>

<pallas_src>
import functools

import jax
import jax.numpy as jnp
from jax import lax
from jax.experimental import pallas as pl
from jax.experimental.pallas import tpu as pltpu


def _bn_relu_kernel(x_ref, gamma_ref, beta_ref, o_ref,
                    sum_ref, sumsq_ref, scale_ref, shift_ref,
                    *, eps, inv_count, hw, hw_tile, need_mask):
    """Grid = (channel_blocks, pass, hw_tiles).

    pass 0: accumulate per-channel sum / sum-of-squares into VMEM scratch.
    pass 1: at the first tile fold stats + gamma/beta into (scale, shift),
            then apply y = max(x*scale + shift, 0) tile by tile.
    """
    p = pl.program_id(1)   # 0 = stats sweep, 1 = normalize sweep
    m = pl.program_id(2)   # H*W tile index

    @pl.when((p == 0) & (m == 0))
    def _init():
        sum_ref[...] = jnp.zeros_like(sum_ref)
        sumsq_ref[...] = jnp.zeros_like(sumsq_ref)

    @pl.when(p == 0)
    def _stats():
        xf = x_ref[...].astype(jnp.float32)            # (N, c_tile, hw_tile)
        if need_mask:
            # Ragged tail: zero out lanes beyond H*W before accumulating.
            lane = lax.broadcasted_iota(jnp.int32, xf.shape, 2)
            valid = (m * hw_tile + lane) < hw
            xf = jnp.where(valid, xf, 0.0)
        # Lane-axis reduce first (XLU), then fold the small N axis.
        sum_ref[...] += jnp.sum(jnp.sum(xf, axis=2, keepdims=True), axis=0)
        sumsq_ref[...] += jnp.sum(jnp.sum(xf * xf, axis=2, keepdims=True),
                                  axis=0)

    @pl.when((p == 1) & (m == 0))
    def _finalize():
        mean = sum_ref[...] * inv_count                           # (c_tile, 1)
        # Biased variance via E[x^2] - mean^2 accumulated in f32; clamp the
        # tiny negative values rounding can produce.
        var = jnp.maximum(sumsq_ref[...] * inv_count - mean * mean, 0.0)
        scale = gamma_ref[...].astype(jnp.float32) * lax.rsqrt(var + eps)
        scale_ref[...] = scale
        shift_ref[...] = beta_ref[...].astype(jnp.float32) - mean * scale

    @pl.when(p == 1)
    def _normalize():
        xf = x_ref[...].astype(jnp.float32)            # (N, c_tile, hw_tile)
        a = scale_ref[...][None, :, :]                 # (1, c_tile, 1)
        b = shift_ref[...][None, :, :]
        o_ref[...] = jnp.maximum(xf * a + b, 0.0).astype(o_ref.dtype)
        # Padded tail lanes (if any) may hold garbage; they are discarded on
        # writeback of the partial output block.


def _tile_plan(n, c, hw, itemsize):
    """Generation-aware tile plan for the two-pass BN+ReLU sweep."""
    # Physical VMEM for this chip (v5e/v6e: 128 MiB, v7x: 64 MiB per TC).
    try:
        info = pltpu.get_tpu_info()
        phys_vmem = int(getattr(info, "vmem_capacity_bytes", 64 << 20))
    except Exception:
        phys_vmem = 64 << 20                     # conservative (v7x) default
    # Hard-clamp the scoped-VMEM request well below physical; never exceeded.
    vmem_limit_cap = min((phys_vmem * 3) // 4, 96 << 20)   # 48 MiB v7x, 96 MiB v5e/v6e
    slab_cap = max((vmem_limit_cap - (4 << 20)) // 4, 1 << 20)   # per buffered block
    # Target block bytes when H*W must be tiled (amortize ~0.35us/step).
    target_block = (4 << 20) if phys_vmem <= (64 << 20) else (8 << 20)
    target_block = min(target_block, slab_cap)

    # Channel tile = packed sublane tile of the storage dtype, else full C.
    sub = {4: 8, 2: 16, 1: 32}.get(itemsize, 8)
    c_tile = sub if (c % sub == 0 and c > sub) else c

    if n * c_tile * hw * itemsize <= slab_cap:
        # Resident slab: the whole (N, c_tile, H*W) block stays in VMEM across
        # both passes, so pass 1 reuses pass 0's buffer (no second HBM read).
        hw_tile = hw
        if c_tile < c:
            # Grow c_tile (divisors of c, multiples of sub) toward the budget,
            # keeping >= 2 channel blocks so v7x megacore uses both cores.
            chosen = c_tile
            for cand in range(sub, c + 1, sub):
                if c % cand != 0:
                    continue
                if c // cand < 2:
                    break
                if n * cand * hw * itemsize > slab_cap:
                    break
                chosen = cand
            c_tile = chosen
    else:
        # Tile H*W in lane-dense multiples of 128 with a masked ragged tail.
        per_lane_group = max(1, n * c_tile * 128 * itemsize)
        hw_tile = max(1, target_block // per_lane_group) * 128
        hw_tile = max(128, min(hw_tile, pl.cdiv(hw, 128) * 128))
        while n * c_tile * hw_tile * itemsize > slab_cap and hw_tile > 128:
            hw_tile -= 128

    c_blocks = c // c_tile
    m_blocks = pl.cdiv(hw, hw_tile)
    block_bytes = n * c_tile * hw_tile * itemsize
    need = 4 * block_bytes + (2 << 20)           # 2 in-bufs + 2 out-bufs + slack
    vmem_limit = int(min(max(need, 8 << 20), vmem_limit_cap))
    return c_tile, c_blocks, hw_tile, m_blocks, vmem_limit


def irev_post_activation(x_nchw, gamma, beta, eps=1e-5):
    """BatchNorm2d (training-mode batch stats) + ReLU, forward only."""
    n, c, h, w = x_nchw.shape
    hw = h * w
    itemsize = jnp.dtype(x_nchw.dtype).itemsize

    # Free reshapes only (no HBM transposes): NCHW -> (N, C, H*W).
    x3 = x_nchw.reshape(n, c, hw)
    g = gamma.reshape(c, 1).astype(jnp.float32)
    b = beta.reshape(c, 1).astype(jnp.float32)

    c_tile, c_blocks, hw_tile, m_blocks, vmem_limit = _tile_plan(
        n, c, hw, itemsize)
    need_mask = (hw % hw_tile) != 0

    kernel = functools.partial(
        _bn_relu_kernel,
        eps=float(eps),
        inv_count=1.0 / float(n * hw),
        hw=hw,
        hw_tile=hw_tile,
        need_mask=need_mask,
    )

    out3 = pl.pallas_call(
        kernel,
        out_shape=jax.ShapeDtypeStruct((n, c, hw), x_nchw.dtype),
        grid=(c_blocks, 2, m_blocks),
        in_specs=[
            pl.BlockSpec((n, c_tile, hw_tile), lambda ci, p, mi: (0, ci, mi)),
            pl.BlockSpec((c_tile, 1), lambda ci, p, mi: (ci, 0)),
            pl.BlockSpec((c_tile, 1), lambda ci, p, mi: (ci, 0)),
        ],
        # During pass 0 the output block index is pinned to the pass-1 first
        # tile, so no (garbage) writeback happens; every output tile is
        # written exactly once, during pass 1.
        out_specs=pl.BlockSpec((n, c_tile, hw_tile),
                               lambda ci, p, mi: (0, ci, mi * p)),
        scratch_shapes=[
            pltpu.VMEM((c_tile, 1), jnp.float32),   # per-channel sum
            pltpu.VMEM((c_tile, 1), jnp.float32),   # per-channel sum of squares
            pltpu.VMEM((c_tile, 1), jnp.float32),   # scale = gamma * inv_std
            pltpu.VMEM((c_tile, 1), jnp.float32),   # shift = beta - mean*scale
        ],
        compiler_params=pltpu.CompilerParams(
            dimension_semantics=("parallel", "arbitrary", "arbitrary"),
            vmem_limit_bytes=int(vmem_limit),
        ),
    )(x3, g, b)

    # (N, C, H*W) -> NCHW (free reshape).
    return out3.reshape(n, c, h, w)


def _reference(x_nchw, gamma, beta, eps=1e-5):
    # Pure-JAX reference of training-mode BatchNorm2d + ReLU.
    mean = jnp.mean(x_nchw, axis=(0, 2, 3), keepdims=True)
    var = jnp.mean((x_nchw - mean) ** 2, axis=(0, 2, 3), keepdims=True)
    y = (x_nchw - mean) / jnp.sqrt(var + eps)
    y = y * gamma.reshape(1, -1, 1, 1) + beta.reshape(1, -1, 1, 1)
    return jnp.maximum(y, 0.0)


def _check(key, shape):
    kx, kg, kb = jax.random.split(key, 3)
    n, c, h, w = shape
    x = jax.random.normal(kx, (n, c, h, w), dtype=jnp.float32)
    # PyTorch default init is gamma=1, beta=0; use non-trivial values so the
    # affine path is actually exercised.
    gamma = jax.random.normal(kg, (c,), dtype=jnp.float32) * 0.5 + 1.0
    beta = jax.random.normal(kb, (c,), dtype=jnp.float32) * 0.1

    out = jax.block_until_ready(irev_post_activation(x, gamma, beta))
    ref = _reference(x, gamma, beta)
    assert out.shape == (n, c, h, w)
    assert jnp.allclose(out, ref, atol=1e-4, rtol=1e-4), \
        float(jnp.max(jnp.abs(out - ref)))


if __name__ == "__main__":
    key = jax.random.PRNGKey(0)
    k0, k1 = jax.random.split(key, 2)

    # Primary small shape consistent with the module (C=4 channels).
    _check(k0, (2, 4, 16, 16))
    # Secondary shape: C multiple of the sublane tile -> 2 channel blocks.
    _check(k1, (2, 16, 12, 12))

    # TODO(synk): running_mean/running_var update (momentum=0.9) is a
    # training-time side effect that does not affect forward(); not emitted.
    print("KERNEL_OK")
</pallas_src>

<mosaic_0001>
module attributes {stable_mosaic.version = 11 : i64} {
  func.func @_bn_relu_kernel(%arg0: i32, %arg1: i32, %arg2: i32, %arg3: memref<2x4x256xf32, #tpu.memory_space<vmem>>, %arg4: memref<4x1xf32, #tpu.memory_space<vmem>>, %arg5: memref<4x1xf32, #tpu.memory_space<vmem>>, %arg6: memref<2x4x256xf32, #tpu.memory_space<vmem>>, %arg7: memref<4x1xf32, #tpu.memory_space<vmem>>, %arg8: memref<4x1xf32, #tpu.memory_space<vmem>>, %arg9: memref<4x1xf32, #tpu.memory_space<vmem>>, %arg10: memref<4x1xf32, #tpu.memory_space<vmem>>) attributes {dimension_semantics = [#tpu.dimension_semantics<parallel>, #tpu.dimension_semantics<arbitrary>, #tpu.dimension_semantics<arbitrary>], iteration_bounds = array<i64: 1, 2, 1>, scalar_prefetch = 0 : i64, scratch_operands = 4 : i64, tpu.core_type = #tpu.core_type<tc>, window_params = [{transform_indices = @transform_0, window_bounds = array<i64: 2, 4, 256>}, {transform_indices = @transform_1, window_bounds = array<i64: 4, 1>}, {transform_indices = @transform_2, window_bounds = array<i64: 4, 1>}, {transform_indices = @transform_3, window_bounds = array<i64: 2, 4, 256>}]} {
    %c0_i32 = arith.constant 0 : i32
    %0 = arith.cmpi eq, %arg1, %c0_i32 : i32
    %c0_i32_0 = arith.constant 0 : i32
    %1 = arith.cmpi eq, %arg2, %c0_i32_0 : i32
    %2 = arith.andi %0, %1 : i1
    %3 = arith.extui %2 : i1 to i32
    %c0_i32_1 = arith.constant 0 : i32
    %4 = arith.cmpi ne, %3, %c0_i32_1 : i32
    scf.if %4 {
      %cst = arith.constant 0.000000e+00 : f32
      %16 = vector.broadcast %cst : f32 to vector<4x1xf32>
      %c0 = arith.constant 0 : index
      %c0_8 = arith.constant 0 : index
      %17 = vector.load %arg7[%c0, %c0_8] : memref<4x1xf32, #tpu.memory_space<vmem>>, vector<4x1xf32>
      tpu.vector_store %arg7[%c0, %c0_8], %16 {strides = array<i32>} : memref<4x1xf32, #tpu.memory_space<vmem>>, vector<4x1xf32>,
      %cst_9 = arith.constant 0.000000e+00 : f32
      %18 = vector.broadcast %cst_9 : f32 to vector<4x1xf32>
      %c0_10 = arith.constant 0 : index
      %c0_11 = arith.constant 0 : index
      %19 = vector.load %arg8[%c0_10, %c0_11] : memref<4x1xf32, #tpu.memory_space<vmem>>, vector<4x1xf32>
      tpu.vector_store %arg8[%c0_10, %c0_11], %18 {strides = array<i32>} : memref<4x1xf32, #tpu.memory_space<vmem>>, vector<4x1xf32>,
    } else {
    }
    %c0_i32_2 = arith.constant 0 : i32
    %5 = arith.cmpi eq, %arg1, %c0_i32_2 : i32
    %6 = arith.extui %5 : i1 to i32
    %c0_i32_3 = arith.constant 0 : i32
    %7 = arith.cmpi ne, %6, %c0_i32_3 : i32
    scf.if %7 {
      %c0 = arith.constant 0 : index
      %c0_8 = arith.constant 0 : index
      %c0_9 = arith.constant 0 : index
      %16 = vector.load %arg3[%c0, %c0_8, %c0_9] : memref<2x4x256xf32, #tpu.memory_space<vmem>>, vector<2x4x256xf32>
      %c0_10 = arith.constant 0 : index
      %c0_11 = arith.constant 0 : index
      %17 = vector.load %arg7[%c0_10, %c0_11] : memref<4x1xf32, #tpu.memory_space<vmem>>, vector<4x1xf32>
      %cst = arith.constant dense<0.000000e+00> : vector<2x4xf32>
      %18 = vector.multi_reduction <add>, %16, %cst [2] : vector<2x4x256xf32> to vector<2x4xf32>
      %19 = vector.shape_cast %18 : vector<2x4xf32> to vector<2x4x1xf32>
      %cst_12 = arith.constant dense<0.000000e+00> : vector<4x1xf32>
      %20 = vector.multi_reduction <add>, %19, %cst_12 [0] : vector<2x4x1xf32> to vector<4x1xf32>
      %21 = arith.addf %17, %20 : vector<4x1xf32>
      %c0_13 = arith.constant 0 : index
      %c0_14 = arith.constant 0 : index
      %22 = vector.load %arg7[%c0_13, %c0_14] : memref<4x1xf32, #tpu.memory_space<vmem>>, vector<4x1xf32>
      tpu.vector_store %arg7[%c0_13, %c0_14], %21 {strides = array<i32>} : memref<4x1xf32, #tpu.memory_space<vmem>>, vector<4x1xf32>,
      %c0_15 = arith.constant 0 : index
      %c0_16 = arith.constant 0 : index
      %23 = vector.load %arg8[%c0_15, %c0_16] : memref<4x1xf32, #tpu.memory_space<vmem>>, vector<4x1xf32>
      %24 = arith.mulf %16, %16 : vector<2x4x256xf32>
      %cst_17 = arith.constant dense<0.000000e+00> : vector<2x4xf32>
      %25 = vector.multi_reduction <add>, %24, %cst_17 [2] : vector<2x4x256xf32> to vector<2x4xf32>
      %26 = vector.shape_cast %25 : vector<2x4xf32> to vector<2x4x1xf32>
      %cst_18 = arith.constant dense<0.000000e+00> : vector<4x1xf32>
      %27 = vector.multi_reduction <add>, %26, %cst_18 [0] : vector<2x4x1xf32> to vector<4x1xf32>
      %28 = arith.addf %23, %27 : vector<4x1xf32>
      %c0_19 = arith.constant 0 : index
      %c0_20 = arith.constant 0 : index
      %29 = vector.load %arg8[%c0_19, %c0_20] : memref<4x1xf32, #tpu.memory_space<vmem>>, vector<4x1xf32>
      tpu.vector_store %arg8[%c0_19, %c0_20], %28 {strides = array<i32>} : memref<4x1xf32, #tpu.memory_space<vmem>>, vector<4x1xf32>,
    } else {
    }
    %c1_i32 = arith.constant 1 : i32
    %8 = arith.cmpi eq, %arg1, %c1_i32 : i32
    %c0_i32_4 = arith.constant 0 : i32
    %9 = arith.cmpi eq, %arg2, %c0_i32_4 : i32
    %10 = arith.andi %8, %9 : i1
    %11 = arith.extui %10 : i1 to i32
    %c0_i32_5 = arith.constant 0 : i32
    %12 = arith.cmpi ne, %11, %c0_i32_5 : i32
    scf.if %12 {
      %c0 = arith.constant 0 : index
      %c0_8 = arith.constant 0 : index
      %16 = vector.load %arg7[%c0, %c0_8] : memref<4x1xf32, #tpu.memory_space<vmem>>, vector<4x1xf32>
      %cst = arith.constant 0.001953125 : f32
      %17 = vector.broadcast %cst : f32 to vector<4x1xf32>
      %18 = arith.mulf %16, %17 : vector<4x1xf32>
      %c0_9 = arith.constant 0 : index
      %c0_10 = arith.constant 0 : index
      %19 = vector.load %arg8[%c0_9, %c0_10] : memref<4x1xf32, #tpu.memory_space<vmem>>, vector<4x1xf32>
      %cst_11 = arith.constant 0.001953125 : f32
      %20 = vector.broadcast %cst_11 : f32 to vector<4x1xf32>
      %21 = arith.mulf %19, %20 : vector<4x1xf32>
      %22 = arith.mulf %18, %18 : vector<4x1xf32>
      %23 = arith.subf %21, %22 : vector<4x1xf32>
      %cst_12 = arith.constant 0.000000e+00 : f32
      %24 = vector.broadcast %cst_12 : f32 to vector<4x1xf32>
      %25 = arith.maximumf %23, %24 : vector<4x1xf32>
      %c0_13 = arith.constant 0 : index
      %c0_14 = arith.constant 0 : index
      %26 = vector.load %arg4[%c0_13, %c0_14] : memref<4x1xf32, #tpu.memory_space<vmem>>, vector<4x1xf32>
      %cst_15 = arith.constant 9.99999974E-6 : f32
      %27 = vector.broadcast %cst_15 : f32 to vector<4x1xf32>
      %28 = arith.addf %25, %27 : vector<4x1xf32>
      %29 = math.rsqrt %28 : vector<4x1xf32>
      %30 = arith.mulf %26, %29 : vector<4x1xf32>
      %c0_16 = arith.constant 0 : index
      %c0_17 = arith.constant 0 : index
      %31 = vector.load %arg9[%c0_16, %c0_17] : memref<4x1xf32, #tpu.memory_space<vmem>>, vector<4x1xf32>
      tpu.vector_store %arg9[%c0_16, %c0_17], %30 {strides = array<i32>} : memref<4x1xf32, #tpu.memory_space<vmem>>, vector<4x1xf32>,
      %c0_18 = arith.constant 0 : index
      %c0_19 = arith.constant 0 : index
      %32 = vector.load %arg5[%c0_18, %c0_19] : memref<4x1xf32, #tpu.memory_space<vmem>>, vector<4x1xf32>
      %33 = arith.mulf %18, %30 : vector<4x1xf32>
      %34 = arith.subf %32, %33 : vector<4x1xf32>
      %c0_20 = arith.constant 0 : index
      %c0_21 = arith.constant 0 : index
      %35 = vector.load %arg10[%c0_20, %c0_21] : memref<4x1xf32, #tpu.memory_space<vmem>>, vector<4x1xf32>
      tpu.vector_store %arg10[%c0_20, %c0_21], %34 {strides = array<i32>} : memref<4x1xf32, #tpu.memory_space<vmem>>, vector<4x1xf32>,
    } else {
    }
    %c1_i32_6 = arith.constant 1 : i32
    %13 = arith.cmpi eq, %arg1, %c1_i32_6 : i32
    %14 = arith.extui %13 : i1 to i32
    %c0_i32_7 = arith.constant 0 : i32
    %15 = arith.cmpi ne, %14, %c0_i32_7 : i32
    scf.if %15 {
      %c0 = arith.constant 0 : index
      %c0_8 = arith.constant 0 : index
      %c0_9 = arith.constant 0 : index
      %16 = vector.load %arg3[%c0, %c0_8, %c0_9] : memref<2x4x256xf32, #tpu.memory_space<vmem>>, vector<2x4x256xf32>
      %c0_10 = arith.constant 0 : index
      %c0_11 = arith.constant 0 : index
      %17 = vector.load %arg9[%c0_10, %c0_11] : memref<4x1xf32, #tpu.memory_space<vmem>>, vector<4x1xf32>
      %18 = vector.shape_cast %17 : vector<4x1xf32> to vector<1x4x1xf32>
      %c0_12 = arith.constant 0 : index
      %c0_13 = arith.constant 0 : index
      %19 = vector.load %arg10[%c0_12, %c0_13] : memref<4x1xf32, #tpu.memory_space<vmem>>, vector<4x1xf32>
      %20 = vector.shape_cast %19 : vector<4x1xf32> to vector<1x4x1xf32>
      %21 = vector.broadcast %18 : vector<1x4x1xf32> to vector<2x4x256xf32>
      %22 = arith.mulf %16, %21 : vector<2x4x256xf32>
      %23 = vector.broadcast %20 : vector<1x4x1xf32> to vector<2x4x256xf32>
      %24 = arith.addf %22, %23 : vector<2x4x256xf32>
      %cst = arith.constant 0.000000e+00 : f32
      %25 = vector.broadcast %cst : f32 to vector<2x4x256xf32>
      %26 = arith.maximumf %24, %25 : vector<2x4x256xf32>
      %c0_14 = arith.constant 0 : index
      %c0_15 = arith.constant 0 : index
      %c0_16 = arith.constant 0 : index
      %27 = vector.load %arg6[%c0_14, %c0_15, %c0_16] : memref<2x4x256xf32, #tpu.memory_space<vmem>>, vector<2x4x256xf32>
      tpu.vector_store %arg6[%c0_14, %c0_15, %c0_16], %26 {strides = array<i32>} : memref<2x4x256xf32, #tpu.memory_space<vmem>>, vector<2x4x256xf32>,
    } else {
    }
    return
  }
  func.func @transform_0(%arg0: i32, %arg1: i32, %arg2: i32) -> (i32, i32, i32) {
    %c0_i32 = arith.constant 0 : i32
    %c0_i32_0 = arith.constant 0 : i32
    return %c0_i32, %arg0, %arg2 : i32, i32, i32
  }
  func.func @transform_1(%arg0: i32, %arg1: i32, %arg2: i32) -> (i32, i32) {
    %c0_i32 = arith.constant 0 : i32
    %c0_i32_0 = arith.constant 0 : i32
    return %arg0, %c0_i32 : i32, i32
  }
  func.func @transform_2(%arg0: i32, %arg1: i32, %arg2: i32) -> (i32, i32) {
    %c0_i32 = arith.constant 0 : i32
    %c0_i32_0 = arith.constant 0 : i32
    return %arg0, %c0_i32 : i32, i32
  }
  func.func @transform_3(%arg0: i32, %arg1: i32, %arg2: i32) -> (i32, i32, i32) {
    %0 = arith.muli %arg2, %arg1 : i32
    %c0_i32 = arith.constant 0 : i32
    %c0_i32_0 = arith.constant 0 : i32
    return %c0_i32, %arg0, %0 : i32, i32, i32
  }
}

</mosaic_0001>

<llo_original>
// kernel: tpu_custom_call.1
$region0: #{tpu_custom_call.1}
  #allocation0 [shape = 'u32[]', space=smem, size = 0x4, offset = 0x4, fixed_abs, tag = 'smem constant byte address 0x4 - core index']
  #allocation1 [shape = 'u32[72,128]{1,0:T(1,128)}', space=vmem, size = 0x9000, scoped, tag = 'internal scratch']
  #allocation2 [shape = 'f32[4,1]{1,0:T(4,128)}', space=vmem, size = 0x800, scoped, tag = 'scratch operand']
  #allocation3 [shape = 'f32[4,1]{1,0:T(4,128)}', space=vmem, size = 0x800, scoped, tag = 'scratch operand']
  #allocation4 [shape = 'f32[4,1]{1,0:T(4,128)}', space=vmem, size = 0x800, scoped, tag = 'scratch operand']
  #allocation5 [shape = 'f32[4,1]{1,0:T(4,128)}', space=vmem, size = 0x800, scoped, tag = 'scratch operand']
  %s0 = inlined_call_operand.hbm [shape: f32[2,4,256], index: 0, kind: input, shape index: {}]
  %s1 = inlined_call_operand.vmem [shape: f32[4,1], index: 1, kind: input, shape index: {}]
  %s2 = inlined_call_operand.vmem [shape: f32[4,1], index: 2, kind: input, shape index: {}]
  %s3 = inlined_call_operand.hbm [shape: f32[2,4,256], index: 3, kind: output, shape index: {}]
  %s4 = sld [smem:[#allocation0]]
  $region65: #{tpu_custom_call.1} parent=0
    _
  %s6 = ssub.s32 1, %s4
  %s7 = scalar_select 0, %s6, %s4
  $region1: #{tpu_custom_call.1} parent=0
    #allocation6 [shape = 'u8[8192]{0}', space=vmem, size = 0x2000, scoped, tag = 'input window, operand 0, single buffered']
    #allocation7 [shape = 's32[2]{0}', space=sflag, size = 0x8, scoped, tag = 'scoped memory for tpu_custom_call.1']
    #allocation8 [shape = 's32[2]{0}', space=sflag, size = 0x8, scoped, tag = 'scoped memory for tpu_custom_call.1']
    #allocation9 [shape = 'u8[16384]{0}', space=vmem, size = 0x4000, scoped, tag = 'output window, operand 0']
    %8 = vsyncpa [#allocation7], 0
    %9 = vsyncpa [#allocation8], 0
    %s10 = scalar_lea.sflag [#allocation8], 1
    %11 = vsyncpa %s10, 0
    loop: start=0, step=1, limit=4
    $region2: #{tpu_custom_call.1} parent=1 // loop_pre_header
      _
    $region3: #{tpu_custom_call.1} parent=1 // loop_header
      %s13 = sphi 0, %s17
      %p14 = scmp.ge.s32.totalorder %s13, 4
      %s20 = sphi 0, %s39
      %s21 = sphi 0, %s35
      %s22 = sphi 0, %s31
      %s23 = sphi 0, %s20
      %s24 = sphi 0, %s21
      %s25 = sphi 0, %s22
      %s26 = sphi 0, %s23
      %s27 = sphi 0, %s24
      %s28 = sphi 0, %s25
      %s44 = sphi 0, %s46
      %s47 = sphi 0, %s44
      %s48 = sphi 0, %s47
      %s64 = sphi 0, %s48
      %s70 = sphi 0, %s72
      %s73 = sphi 0, %s70
      %s74 = sphi 0, %s73
      %s90 = sphi 0, %s74
      %s96 = sphi 0, %s98
      %s99 = sphi 0, %s96
      %s100 = sphi 0, %s99
      %s116 = sphi 0, %s100
      %s126 = sphi 0, %s128
      %s129 = sphi 0, %s126
      %s130 = sphi 0, %s129
      %s146 = sphi 0, %s130
    $region4: #{tpu_custom_call.1} parent=1 // loop_header_branch
      %16 = sbr.rel (%p14) target = $region8
    $region5: #{tpu_custom_call.1} parent=1 // loop_body
      %s18 = ssub.s32 %s13, 1
      %s19 = ssub.s32 %s13, 2
      %s29 = sadd.s32 1, %s22
      %p30 = scmp.ge.s32.totalorder %s29, 1
      %s31 = scalar_select %p30, 0, %s29
      %s32 = sadd.s32 1, %s21
      %s33 = scalar_select %p30, %s32, %s21
      %p34 = scmp.ge.s32.totalorder %s33, 2
      %s35 = scalar_select %p34, 0, %s33
      %s36 = sadd.s32 1, %s20
      %s37 = scalar_select %p34, %s36, %s20
      %p38 = scmp.ge.s32.totalorder %s37, 1
      %s39 = scalar_select %p38, 0, %s37
      %s40 = ssub.s32 %s20, %s39
      %s41 = ssub.s32 %s22, %s31
      %s42 = sor.u32 %s40, %s41
      %p43 = scmp.eq.s32.totalorder %s42, 0
      %s45 = sadd.s32 %s44, 1
      %s46 = scalar_select %p43, %s44, %s45
      %p49 = pneg %p43
      %p50 = scmp.eq.s32.totalorder %s13, 1
      %p51 = por %p49, %p50
      %p52 = scmp.ne.s32.totalorder %s44, %s47
      %p53 = scmp.eq.s32.totalorder %s13, 0
      %p54 = por %p52, %p53
      %p55 = scmp.ne.s32.totalorder %s44, %s47
      %p56 = scmp.eq.s32.totalorder %s18, 1
      %p57 = por %p55, %p56
      %p58 = scmp.ne.s32.totalorder %s47, %s48
      %p59 = scmp.eq.s32.totalorder %s18, 0
      %p60 = por %p58, %p59
      %p61 = scmp.ne.s32.totalorder %s47, %s48
      %p62 = scmp.eq.s32.totalorder %s19, 1
      %p63 = por %p61, %p62
      %p65 = scmp.ne.s32.totalorder %s48, %s64
      %p66 = scmp.eq.s32.totalorder %s19, 0
      %p67 = por %p65, %p66
      %s68 = ssub.s32 %s20, %s39
      %p69 = scmp.eq.s32.totalorder %s68, 0
      %s71 = sadd.s32 %s70, 1
      %s72 = scalar_select %p69, %s70, %s71
      %p75 = pneg %p69
      %p76 = scmp.eq.s32.totalorder %s13, 1
      %p77 = por %p75, %p76
      %p78 = scmp.ne.s32.totalorder %s70, %s73
      %p79 = scmp.eq.s32.totalorder %s13, 0
      %p80 = por %p78, %p79
      %p81 = scmp.ne.s32.totalorder %s70, %s73
      %p82 = scmp.eq.s32.totalorder %s18, 1
      %p83 = por %p81, %p82
      %p84 = scmp.ne.s32.totalorder %s73, %s74
      %p85 = scmp.eq.s32.totalorder %s18, 0
      %p86 = por %p84, %p85
      %p87 = scmp.ne.s32.totalorder %s73, %s74
      %p88 = scmp.eq.s32.totalorder %s19, 1
      %p89 = por %p87, %p88
      %p91 = scmp.ne.s32.totalorder %s74, %s90
      %p92 = scmp.eq.s32.totalorder %s19, 0
      %p93 = por %p91, %p92
      %s94 = ssub.s32 %s20, %s39
      %p95 = scmp.eq.s32.totalorder %s94, 0
      %s97 = sadd.s32 %s96, 1
      %s98 = scalar_select %p95, %s96, %s97
      %p101 = pneg %p95
      %p102 = scmp.eq.s32.totalorder %s13, 1
      %p103 = por %p101, %p102
      %p104 = scmp.ne.s32.totalorder %s96, %s99
      %p105 = scmp.eq.s32.totalorder %s13, 0
      %p106 = por %p104, %p105
      %p107 = scmp.ne.s32.totalorder %s96, %s99
      %p108 = scmp.eq.s32.totalorder %s18, 1
      %p109 = por %p107, %p108
      %p110 = scmp.ne.s32.totalorder %s99, %s100
      %p111 = scmp.eq.s32.totalorder %s18, 0
      %p112 = por %p110, %p111
      %p113 = scmp.ne.s32.totalorder %s99, %s100
      %p114 = scmp.eq.s32.totalorder %s19, 1
      %p115 = por %p113, %p114
      %p117 = scmp.ne.s32.totalorder %s100, %s116
      %p118 = scmp.eq.s32.totalorder %s19, 0
      %p119 = por %p117, %p118
      %s120 = smul.u32 %s22, %s21
      %s121 = smul.u32 %s31, %s35
      %s122 = ssub.s32 %s20, %s39
      %s123 = ssub.s32 %s120, %s121
      %s124 = sor.u32 %s122, %s123
      %p125 = scmp.eq.s32.totalorder %s124, 0
      %s127 = sadd.s32 %s126, 1
      %s128 = scalar_select %p125, %s126, %s127
      %p131 = pneg %p125
      %p132 = scmp.eq.s32.totalorder %s13, 1
      %p133 = por %p131, %p132
      %p134 = scmp.ne.s32.totalorder %s126, %s129
      %p135 = scmp.eq.s32.totalorder %s13, 0
      %p136 = por %p134, %p135
      %p137 = scmp.ne.s32.totalorder %s126, %s129
      %p138 = scmp.eq.s32.totalorder %s18, 1
      %p139 = por %p137, %p138
      %p140 = scmp.ne.s32.totalorder %s129, %s130
      %p141 = scmp.eq.s32.totalorder %s18, 0
      %p142 = por %p140, %p141
      %p143 = scmp.ne.s32.totalorder %s129, %s130
      %p144 = scmp.eq.s32.totalorder %s19, 1
      %p145 = por %p143, %p144
      %p147 = scmp.ne.s32.totalorder %s130, %s146
      %p148 = scmp.eq.s32.totalorder %s19, 0
      %p149 = por %p147, %p148
      %p150 = scmp.le.s32.totalorder 1, %s13
      %p151 = scmp.lt.s32.totalorder %s13, 3
      %p152 = pnand %p150, %p151
      %p153 = pneg %p152
      // Predicated region
      $region9: #{tpu_custom_call.1} parent=5 // pred_check
        _
      $region10: #{tpu_custom_call.1} parent=5 // pred_check_branch
        %155 = sbr.rel (%p152) target = $region12
      $region11: #{tpu_custom_call.1} parent=5 // pred_region
        %s156 = ssub.s32 %s13, 1
        // Predicated region
        $region13: #{tpu_custom_call.1} parent=11 // pred_check
          %p157 = pneg %p60
        $region14: #{tpu_custom_call.1} parent=11 // pred_check_branch
          %159 = sbr.rel (%p157) target = $region16
        $region15: #{tpu_custom_call.1} parent=11 // pred_region
          %s160 = smul.u32 2, %s25
          %162 = vsyncadd [#allocation7], 0
          %s163 = smul.addr %s23, 2
          %s164 = sadd.s32 %s160, %s163
          %s165 = smul.addr %s164, 4
          %s166 = scalar_lea.hbm %s0, %s165
          %s167 = sshll.u32 %s166, 4
          %s168 = int_to_ptr.hbm [resolvable:$true] %s167
          %s169 = sshll.u32 [#allocation6], 4
          %s170 = int_to_ptr.vmem [resolvable:$true] %s169
          %175 = dma.hbm_to_vmem [thread:$0]  %s168, 256, %s170, [#allocation7], 128, 128, 8
        $region16: #{tpu_custom_call.1} parent=11 // pred_fallthru
          _
        // Predicated region
        $region17: #{tpu_custom_call.1} parent=11 // pred_check
          %p176 = pneg %p86
        $region18: #{tpu_custom_call.1} parent=11 // pred_check_branch
          %178 = sbr.rel (%p176) target = $region20
        $region19: #{tpu_custom_call.1} parent=11 // pred_region
          %p179 = scmp.lt.s32.totalorder %s23, 0
          %s180 = scalar_select %p179, %s23, 0
          %s181 = smul.addr %s180, 4
          %s182 = scalar_lea.vmem %s1, %s181
        $region20: #{tpu_custom_call.1} parent=11 // pred_fallthru
          _
        // Predicated region
        $region21: #{tpu_custom_call.1} parent=11 // pred_check
          %p183 = pneg %p112
        $region22: #{tpu_custom_call.1} parent=11 // pred_check_branch
          %185 = sbr.rel (%p183) target = $region24
        $region23: #{tpu_custom_call.1} parent=11 // pred_region
          %p186 = scmp.lt.s32.totalorder %s23, 0
          %s187 = scalar_select %p186, %s23, 0
          %s188 = smul.addr %s187, 4
          %s189 = scalar_lea.vmem %s2, %s188
        $region24: #{tpu_custom_call.1} parent=11 // pred_fallthru
          _
      $region12: #{tpu_custom_call.1} parent=5 // pred_fallthru
        _
      %p190 = scmp.lt.s32.totalorder %s13, 2
      // Predicated region
      $region25: #{tpu_custom_call.1} parent=5 // pred_check
        %p191 = pneg %p190
      $region26: #{tpu_custom_call.1} parent=5 // pred_check_branch
        %193 = sbr.rel (%p191) target = $region28
      $region27: #{tpu_custom_call.1} parent=5 // pred_region
        _
      $region28: #{tpu_custom_call.1} parent=5 // pred_fallthru
        _
      %p194 = scmp.le.s32.totalorder 1, %s13
      %p195 = scmp.lt.s32.totalorder %s13, 3
      %p196 = pnand %p194, %p195
      %p197 = pneg %p196
      // Predicated region
      $region29: #{tpu_custom_call.1} parent=5 // pred_check
        _
      $region30: #{tpu_custom_call.1} parent=5 // pred_check_branch
        %199 = sbr.rel (%p196) target = $region32
      $region31: #{tpu_custom_call.1} parent=5 // pred_region
        %s200 = ssub.s32 %s13, 1
        // Predicated region
        $region33: #{tpu_custom_call.1} parent=31 // pred_check
          %p201 = pneg %p60
        $region34: #{tpu_custom_call.1} parent=31 // pred_check_branch
          %203 = sbr.rel (%p201) target = $region36
        $region35: #{tpu_custom_call.1} parent=31 // pred_region
          %205 = dma.done [#allocation7], 256
        $region36: #{tpu_custom_call.1} parent=31 // pred_fallthru
          _
        %p206 = pneg %p60
        %p207 = pneg %p57
        %p208 = scmp.lt.s32.totalorder %s23, 0
        %s209 = scalar_select %p208, %s23, 0
        %s210 = smul.addr %s209, 4
        %s211 = scalar_lea.vmem %s1, %s210
        %p212 = pneg %p86
        %p213 = pneg %p83
        %p214 = scmp.lt.s32.totalorder %s23, 0
        %s215 = scalar_select %p214, %s23, 0
        %s216 = smul.addr %s215, 4
        %s217 = scalar_lea.vmem %s2, %s216
        %p218 = pneg %p112
        %p219 = pneg %p109
        %p220 = pneg %p142
        %p221 = pneg %p139
        %s222 = sand.u32 %s129, 1
        %s223 = scalar_lea.sflag [#allocation8], %s222
        %s224 = sand.u32 %s129, 1
        %s225 = smul.addr %s224, 16
        %s226 = scalar_lea.vmem [#allocation9], %s225
        %s227 = smul.u32 2, %s25
        %p228 = scmp.lt.s32.totalorder %s23, 0
        %s229 = scalar_select %p228, %s23, 0
        %s230 = smul.addr %s229, 4
        %s231 = scalar_lea.vmem %s1, %s230
        %p232 = scmp.lt.s32.totalorder %s23, 0
        %s233 = scalar_select %p232, %s23, 0
        %s234 = smul.addr %s233, 4
        %s235 = scalar_lea.vmem %s2, %s234
        %s236 = smul.u32 %s25, %s24
        %s237 = smul.u32 2, %s236
        %p238 = scmp.eq.s32.totalorder %s24, 0
        %p239 = scmp.eq.s32.totalorder %s25, 0
        %p240 = pnand %p238, %p239
        %p241 = pneg %p240
        // Predicated region
        $region37: #{tpu_custom_call.1} parent=31 // pred_check
          _
        $region38: #{tpu_custom_call.1} parent=31 // pred_check_branch
          %243 = sbr.rel (%p240) target = $region40
        $region39: #{tpu_custom_call.1} parent=31 // pred_region
          %vm244 = vcmask 3072
          %245 = vst.msk [vmem:[#allocation2] sm:$0xf] %vm244, 0.0
          %246 = vst.msk [vmem:[#allocation3] sm:$0xf] %vm244, 0.0
        $region40: #{tpu_custom_call.1} parent=31 // pred_fallthru
          _
        // Predicated region
        $region41: #{tpu_custom_call.1} parent=31 // pred_check
          %p247 = pneg %p238
        $region42: #{tpu_custom_call.1} parent=31 // pred_check_branch
          %249 = sbr.rel (%p247) target = $region44
        $region43: #{tpu_custom_call.1} parent=31 // pred_region
          %v250 = vld [vmem:[#allocation6] sm:$0xff]
          %v251 = vld [vmem:[#allocation6 + $0x8] sm:$0xff]
          %v252 = vld [vmem:[#allocation2] sm:$0xf]
          %255 = vst [vmem:[#allocation1] ss:$2 sm:$0xff] %v250
          %v256 = vld.sshfl [vmem:[#allocation1] sm:$0xff pattern:$0x75316420]
          %v257 = vld.sshfl [vmem:[#allocation1 + $0x8] sm:$0xff pattern:$0x75316420]
          %s258 = scalar_lea.vmem [#allocation1], 16
          %259 = vst [vmem:[%s258] ss:$2 sm:$0xff] %v251
          %v260 = vld.sshfl [vmem:[#allocation1 + $0x10] sm:$0xff pattern:$0x75316420]
          %v261 = vld.sshfl [vmem:[#allocation1 + $0x18] sm:$0xff pattern:$0x75316420]
          %vm266 = vcmask 1043456
          %v267 = vsel %vm266, %v256, 0.0
          %v268 = vsel %vm266, %v257, 0.0
          %v269 = vadd.f32 %v267, %v268
          %270 = vadd.xlane.f32.xlu0 %v269
          %v271 = vpop.xlane.xlu0 %270
          %v272 = vsel %vm266, %v260, 0.0
          %v273 = vsel %vm266, %v261, 0.0
          %v274 = vadd.f32 %v272, %v273
          %275 = vadd.xlane.f32.xlu0 %v274
          %v276 = vpop.xlane.xlu0 %275
          %v277 = vsel %vm266, %v271, 0.0
          %v278 = vsel %vm266, %v276, 0.0
          %v279 = vadd.f32 %v277, %v278
          %v280 = vadd.f32 %v252, %v279
          %vm281 = vcmask 3072
          %282 = vst.msk [vmem:[#allocation2] sm:$0xf] %vm281, %v280
          %v283 = vld [vmem:[#allocation3] sm:$0xf]
          %v284 = vmul.f32 %v250, %v250
          %v285 = vmul.f32 %v251, %v251
          %288 = vst [vmem:[#allocation1] ss:$2 sm:$0xff] %v284
          %v289 = vld.sshfl [vmem:[#allocation1] sm:$0xff pattern:$0x75316420]
          %v290 = vld.sshfl [vmem:[#allocation1 + $0x8] sm:$0xff pattern:$0x75316420]
          %s291 = scalar_lea.vmem [#allocation1], 16
          %292 = vst [vmem:[%s291] ss:$2 sm:$0xff] %v285
          %v293 = vld.sshfl [vmem:[#allocation1 + $0x10] sm:$0xff pattern:$0x75316420]
          %v294 = vld.sshfl [vmem:[#allocation1 + $0x18] sm:$0xff pattern:$0x75316420]
          %v299 = vsel %vm266, %v289, 0.0
          %v300 = vsel %vm266, %v290, 0.0
          %v301 = vadd.f32 %v299, %v300
          %302 = vadd.xlane.f32.xlu0 %v301
          %v303 = vpop.xlane.xlu0 %302
          %v304 = vsel %vm266, %v293, 0.0
          %v305 = vsel %vm266, %v294, 0.0
          %v306 = vadd.f32 %v304, %v305
          %307 = vadd.xlane.f32.xlu0 %v306
          %v308 = vpop.xlane.xlu0 %307
          %v309 = vsel %vm266, %v303, 0.0
          %v310 = vsel %vm266, %v308, 0.0
          %v311 = vadd.f32 %v309, %v310
          %v312 = vadd.f32 %v283, %v311
          %313 = vst.msk [vmem:[#allocation3] sm:$0xf] %vm281, %v312
        $region44: #{tpu_custom_call.1} parent=31 // pred_fallthru
          _
        %p314 = scmp.eq.s32.totalorder %s24, 1
        %p315 = pnand %p314, %p239
        %p316 = pneg %p315
        // Predicated region
        $region45: #{tpu_custom_call.1} parent=31 // pred_check
          _
        $region46: #{tpu_custom_call.1} parent=31 // pred_check_branch
          %318 = sbr.rel (%p315) target = $region48
        $region47: #{tpu_custom_call.1} parent=31 // pred_region
          %v319 = vld [vmem:[#allocation2] sm:$0xf]
          %v320 = vmul.f32 %v319, 0.001953125
          %v321 = vld [vmem:[#allocation3] sm:$0xf]
          %v322 = vmul.f32 %v321, 0.001953125
          %v323 = vmul.f32 %v320, %v320
          %v324 = vsub.f32 %v322, %v323
          %v325 = vmax.f32 %v324, 0.0
          %v326 = vld [vmem:[%s231] sm:$0xf]
          %v327 = vadd.f32 %v325, 1e-05
          %v328 = vrsqrt.pop %v327
          %v329 = vmul.f32 %v328, %v327
          %v330 = vmul.f32 %v329, %v328
          %v331 = vmul.f32 0.5, %v330
          %v332 = vsub.f32 1.5, %v331
          %v333 = vmul.f32 %v328, %v332
          %vm334 = vweird.f32 %v327
          %vm335 = vweird.f32 %v328
          %vm336 = vmor %vm334, %vm335
          %v337 = vsel %vm336, %v328, %v333
          %v338 = vmul.f32 %v326, %v337
          %vm339 = vcmask 3072
          %340 = vst.msk [vmem:[#allocation4] sm:$0xf] %vm339, %v338
          %v341 = vld [vmem:[%s235] sm:$0xf]
          %v342 = vmul.f32 %v320, %v338
          %v343 = vsub.f32 %v341, %v342
          %344 = vst.msk [vmem:[#allocation5] sm:$0xf] %vm339, %v343
        $region48: #{tpu_custom_call.1} parent=31 // pred_fallthru
          _
        // Predicated region
        $region49: #{tpu_custom_call.1} parent=31 // pred_check
          %p345 = pneg %p314
        $region50: #{tpu_custom_call.1} parent=31 // pred_check_branch
          %347 = sbr.rel (%p345) target = $region52
        $region51: #{tpu_custom_call.1} parent=31 // pred_region
          %v348 = vld [vmem:[#allocation6] sm:$0xff]
          %v349 = vld [vmem:[#allocation6 + $0x8] sm:$0xff]
          %v350 = vld [vmem:[#allocation4] sm:$0xf]
          %v351 = vld [vmem:[#allocation5] sm:$0xf]
          %353 = vset.pattern.permute.xlu0 0
          %354 = vperm.xlu0 %353, %v350
          %v355 = vpop.permute.xlu0 %354
          %v357 = vunpack.c.l.s4 839922192
          %v358 = vunpack.c.0.s8 %v357
          %v359 = vperm.slane %v355, %v358
          %v361 = vmul.f32 %v348, %v359
          %v362 = vmul.f32 %v349, %v359
          %364 = vset.pattern.permute.xlu0 0
          %365 = vperm.xlu0 %364, %v351
          %v366 = vpop.permute.xlu0 %365
          %v368 = vunpack.c.l.s4 839922192
          %v369 = vunpack.c.0.s8 %v368
          %v370 = vperm.slane %v366, %v369
          %v372 = vadd.f32 %v361, %v370
          %v373 = vadd.f32 %v362, %v370
          %v374 = vmax.f32 %v372, 0.0
          %v375 = vmax.f32 %v373, 0.0
          %376 = vst [vmem:[%s226] sm:$0xff] %v374
          %377 = vst [vmem:[%s226 + $0x8] sm:$0xff] %v375
        $region52: #{tpu_custom_call.1} parent=31 // pred_fallthru
          _
        %s378 = sand.u32 %s129, 1
        %s379 = scalar_lea.sflag [#allocation8], %s378
        %s380 = sand.u32 %s129, 1
        %s381 = smul.addr %s380, 16
        %s382 = scalar_lea.vmem [#allocation9], %s381
        // Predicated region
        $region53: #{tpu_custom_call.1} parent=31 // pred_check
          %p383 = pneg %p139
        $region54: #{tpu_custom_call.1} parent=31 // pred_check_branch
          %385 = sbr.rel (%p383) target = $region56
        $region55: #{tpu_custom_call.1} parent=31 // pred_region
          %s386 = smul.u32 %s25, %s24
          %s387 = smul.u32 2, %s386
          %389 = vsyncadd %s379, 0
          %s390 = smul.addr %s23, 2
          %s391 = sadd.s32 %s387, %s390
          %s392 = smul.addr %s391, 4
          %s393 = scalar_lea.hbm %s3, %s392
          %s394 = sshll.u32 %s382, 4
          %s395 = int_to_ptr.vmem [resolvable:$true] %s394
          %s396 = sshll.u32 %s393, 4
          %s397 = int_to_ptr.hbm [resolvable:$true] %s396
          %402 = dma.vmem_to_hbm [thread:$0]  %s395, 256, %s397, %s379, 128, 128, 8
        $region56: #{tpu_custom_call.1} parent=31 // pred_fallthru
          _
      $region32: #{tpu_custom_call.1} parent=5 // pred_fallthru
        _
      %p403 = scmp.le.s32.totalorder 2, %s13
      // Predicated region
      $region57: #{tpu_custom_call.1} parent=5 // pred_check
        %p404 = pneg %p403
      $region58: #{tpu_custom_call.1} parent=5 // pred_check_branch
        %406 = sbr.rel (%p404) target = $region60
      $region59: #{tpu_custom_call.1} parent=5 // pred_region
        %s407 = ssub.s32 %s13, 2
        // Predicated region
        $region61: #{tpu_custom_call.1} parent=59 // pred_check
          %p408 = pneg %p145
        $region62: #{tpu_custom_call.1} parent=59 // pred_check_branch
          %410 = sbr.rel (%p408) target = $region64
        $region63: #{tpu_custom_call.1} parent=59 // pred_region
          %s411 = sand.u32 %s130, 1
          %s412 = scalar_lea.sflag [#allocation8], %s411
          %s413 = sand.u32 %s130, 1
          %s414 = smul.addr %s413, 16
          %s415 = scalar_lea.vmem [#allocation9], %s414
          %417 = dma.done %s412, 256
        $region64: #{tpu_custom_call.1} parent=59 // pred_fallthru
          _
      $region60: #{tpu_custom_call.1} parent=5 // pred_fallthru
        _
    $region6: #{tpu_custom_call.1} parent=1 // loop_footer
      %s17 = sadd.s32 1, %s13
    $region7: #{tpu_custom_call.1} parent=1 // loop_footer_branch
      %12 = sbr.rel target = $region3
    $region8: #{tpu_custom_call.1} parent=1 // loop_exit
      _
    %418 = vsyncpa [#allocation7], 1
    %s419 = scalar_lea.sflag [#allocation7], 1
    %420 = vsyncpa %s419, 1
    %421 = vsyncpa [#allocation8], 1
    %s422 = scalar_lea.sflag [#allocation8], 1
    %423 = vsyncpa %s422, 1

</llo_original>
